<compile_context>
chip_gen: v7x
topology: tpu7x:2x2x1
jax: 0.10.0
libtpu: 0.0.40
codegen_flags: <defaults>
</compile_context>

<pallas_src>
import functools

import jax
import jax.numpy as jnp
from jax.experimental import pallas as pl
from jax.experimental.pallas import tpu as pltpu

_EPS = 1e-12  # F.normalize default eps


# ------------------------------ Pallas kernel --------------------------------
def _cosine_classifier_kernel(x_ref, w_ref, o_ref, inv_cn_ref):
    b_idx = pl.program_id(1)

    # Column inverse norms of this W tile: computed once per C-tile (b_idx==0)
    # into VMEM scratch and reused for every B step.  The W tile itself also
    # stays resident across B steps (its block index only depends on c).
    @pl.when(b_idx == 0)
    def _():
        w = w_ref[...]                                            # (D, tn) f32
        col_ss = jnp.sum(w * w, axis=0, keepdims=True)            # (1, tn)
        inv_cn_ref[...] = jax.lax.rsqrt(jnp.maximum(col_ss, _EPS * _EPS))

    x = x_ref[...]                                                # (tm, D) f32
    row_ss = jnp.sum(x * x, axis=1, keepdims=True)                # (tm, 1)
    inv_rn = jax.lax.rsqrt(jnp.maximum(row_ss, _EPS * _EPS))

    # Raw matmul on bf16 operands (MXU fast path), f32 accumulation, then
    # scale the small output tile by the row/column inverse norms.
    s = jnp.dot(x.astype(jnp.bfloat16),
                w_ref[...].astype(jnp.bfloat16),
                preferred_element_type=jnp.float32)               # (tm, tn) f32
    o_ref[...] = s * inv_rn * inv_cn_ref[...]


# --------------------------------- wrapper -----------------------------------
def _round_up(n, m):
    return ((n + m - 1) // m) * m


def _pick_tile(total, preferred, align):
    """Largest multiple-of-`align` tile <= preferred that divides `total`."""
    t = max(align, (min(total, preferred) // align) * align)
    while total % t:
        t -= align
    return t


def cosine_classifier(x, w, *, tm=256, tn=512):
    """out = F.normalize(x, dim=1) @ F.normalize(w, dim=0).

    x: (B, hidden_dim) float32, w: (hidden_dim, num_class) float32
    returns: (B, num_class) float32
    """
    B, D = x.shape
    Dw, C = w.shape
    assert D == Dw, "feature dims must match"

    # Alignment padding (zero padding is mathematically inert here).  This is a
    # no-op when shapes are already aligned; for production, pad W once at init.
    Bp, Dp, Cp = _round_up(B, 8), _round_up(D, 128), _round_up(C, 128)
    if (Bp, Dp) != (B, D):
        x = jnp.pad(x, ((0, Bp - B), (0, Dp - D)))
    if (Dp, Cp) != (D, C):
        w = jnp.pad(w, ((0, Dp - D), (0, Cp - C)))

    tm = _pick_tile(Bp, tm, 8)
    tn = _pick_tile(Cp, tn, 128)
    # TODO(synk): for very large hidden_dim add a K grid axis over D with an
    # f32 accumulator (pl.when init/finalize); here D is kept whole per tile.

    grid = (Cp // tn, Bp // tm)  # C outer: W tile + its col-norms stay resident

    # Double-buffered x/W/out tiles + the (1, tn) scratch; cap at 64 MiB so the
    # same setting is safe on v7x (64 MiB physical VMEM).
    vmem_need = 4 * (2 * tm * Dp + 2 * Dp * tn + 2 * tm * tn + tn)
    vmem_limit = int(min(max(2 * vmem_need, 32 * 1024 * 1024), 64 * 1024 * 1024))

    out = pl.pallas_call(
        _cosine_classifier_kernel,
        out_shape=jax.ShapeDtypeStruct((Bp, Cp), jnp.float32),
        grid_spec=pltpu.PrefetchScalarGridSpec(
            num_scalar_prefetch=0,
            grid=grid,
            in_specs=[
                pl.BlockSpec((tm, Dp), lambda c, b: (b, 0)),   # x row-tile
                pl.BlockSpec((Dp, tn), lambda c, b: (0, c)),   # W col-tile
            ],
            out_specs=pl.BlockSpec((tm, tn), lambda c, b: (b, c)),
            scratch_shapes=[pltpu.VMEM((1, tn), jnp.float32)],  # inv col norms
        ),
        compiler_params=pltpu.CompilerParams(
            dimension_semantics=("parallel", "arbitrary"),
            vmem_limit_bytes=vmem_limit,
        ),
        cost_estimate=pl.CostEstimate(
            flops=2 * Bp * Dp * Cp,
            transcendentals=Bp * (Cp // tn) + Cp,
            bytes_accessed=4 * (Bp * Dp * (Cp // tn) + Dp * Cp + Bp * Cp),
        ),
    )(x, w)

    if (Bp, Cp) != (B, C):
        out = out[:B, :C]
    return out


# --------------------------- parameter construction --------------------------
def init_cosine_classifier(key, hidden_dim, num_class):
    # Mirrors the W-is-None path of __init__:
    #   W = orthogonal_(Tensor(hidden_dim, hidden_dim))[:, :num_class]
    # (init-time code, plain JAX — not part of the forward kernel)
    a = jax.random.normal(key, (hidden_dim, hidden_dim), jnp.float32)
    q, r = jnp.linalg.qr(a)
    q = q * jnp.sign(jnp.diagonal(r))[None, :]   # sign fix, torch convention
    return q[:, :num_class]


# ----------------------------------- main -------------------------------------
if __name__ == "__main__":
    B = 16
    HIDDEN_DIM = 256
    NUM_CLASS = 256

    key = jax.random.PRNGKey(0)
    kw, kx = jax.random.split(key)
    W = init_cosine_classifier(kw, HIDDEN_DIM, NUM_CLASS)     # (256, 256)
    x = jax.random.normal(kx, (B, HIDDEN_DIM), jnp.float32)   # (16, 256)

    # Small tiles so the 2x2 grid exercises the scratch-reuse / pl.when path.
    fwd = jax.jit(functools.partial(cosine_classifier, tm=8, tn=128))
    out = jax.block_until_ready(fwd(x, W))
    assert out.shape == (B, NUM_CLASS)

    # pure-JAX reference check (same math, XLA ops, f32 throughout)
    def ref(xv, wv):
        wn = wv / jnp.maximum(jnp.linalg.norm(wv, axis=0, keepdims=True), _EPS)
        xn = xv / jnp.maximum(jnp.linalg.norm(xv, axis=1, keepdims=True), _EPS)
        return xn @ wn

    expected = ref(x, W)
    assert jnp.allclose(out, expected, atol=2e-2, rtol=2e-2), float(
        jnp.max(jnp.abs(out - expected)))
    # cosine similarities are bounded (bf16 MXU feed allows a small overshoot)
    assert bool(jnp.all(jnp.abs(out) <= 1.0 + 2e-2))

    print("KERNEL_OK")
</pallas_src>

<mosaic_0001>
module attributes {stable_mosaic.version = 11 : i64} {
  func.func @_cosine_classifier_kernel(%arg0: i32, %arg1: i32, %arg2: memref<8x256xf32, #tpu.memory_space<vmem>>, %arg3: memref<256x128xf32, #tpu.memory_space<vmem>>, %arg4: memref<8x128xf32, #tpu.memory_space<vmem>>, %arg5: memref<1x128xf32, #tpu.memory_space<vmem>>) attributes {dimension_semantics = [#tpu.dimension_semantics<parallel>, #tpu.dimension_semantics<arbitrary>], iteration_bounds = array<i64: 2, 2>, scalar_prefetch = 0 : i64, scratch_operands = 1 : i64, tpu.core_type = #tpu.core_type<tc>, window_params = [{transform_indices = @transform_0, window_bounds = array<i64: 8, 256>}, {transform_indices = @transform_1, window_bounds = array<i64: 256, 128>}, {transform_indices = @transform_2, window_bounds = array<i64: 8, 128>}]} {
    %c0_i32 = arith.constant 0 : i32
    %0 = arith.cmpi eq, %arg1, %c0_i32 : i32
    %1 = arith.extui %0 : i1 to i32
    %c0_i32_0 = arith.constant 0 : i32
    %2 = arith.cmpi ne, %1, %c0_i32_0 : i32
    scf.if %2 {
      %c0_10 = arith.constant 0 : index
      %c0_11 = arith.constant 0 : index
      %20 = vector.load %arg3[%c0_10, %c0_11] : memref<256x128xf32, #tpu.memory_space<vmem>>, vector<256x128xf32>
      %21 = arith.mulf %20, %20 : vector<256x128xf32>
      %cst_12 = arith.constant dense<0.000000e+00> : vector<128xf32>
      %22 = vector.multi_reduction <add>, %21, %cst_12 [0] : vector<256x128xf32> to vector<128xf32>
      %23 = vector.shape_cast %22 : vector<128xf32> to vector<1x128xf32>
      %cst_13 = arith.constant 1.000000e-24 : f32
      %24 = vector.broadcast %cst_13 : f32 to vector<1x128xf32>
      %25 = arith.maximumf %23, %24 : vector<1x128xf32>
      %26 = math.rsqrt %25 : vector<1x128xf32>
      %c0_14 = arith.constant 0 : index
      %c0_15 = arith.constant 0 : index
      %27 = vector.load %arg5[%c0_14, %c0_15] : memref<1x128xf32, #tpu.memory_space<vmem>>, vector<1x128xf32>
      tpu.vector_store %arg5[%c0_14, %c0_15], %26 {strides = array<i32>} : memref<1x128xf32, #tpu.memory_space<vmem>>, vector<1x128xf32>,
    } else {
    }
    %c0 = arith.constant 0 : index
    %c0_1 = arith.constant 0 : index
    %3 = vector.load %arg2[%c0, %c0_1] : memref<8x256xf32, #tpu.memory_space<vmem>>, vector<8x256xf32>
    %4 = arith.mulf %3, %3 : vector<8x256xf32>
    %cst = arith.constant dense<0.000000e+00> : vector<8xf32>
    %5 = vector.multi_reduction <add>, %4, %cst [1] : vector<8x256xf32> to vector<8xf32>
    %6 = vector.shape_cast %5 : vector<8xf32> to vector<8x1xf32>
    %cst_2 = arith.constant 1.000000e-24 : f32
    %7 = vector.broadcast %cst_2 : f32 to vector<8x1xf32>
    %8 = arith.maximumf %6, %7 : vector<8x1xf32>
    %9 = math.rsqrt %8 : vector<8x1xf32>
    %10 = arith.truncf %3 : vector<8x256xf32> to vector<8x256xbf16>
    %c0_3 = arith.constant 0 : index
    %c0_4 = arith.constant 0 : index
    %11 = vector.load %arg3[%c0_3, %c0_4] : memref<256x128xf32, #tpu.memory_space<vmem>>, vector<256x128xf32>
    %12 = arith.truncf %11 : vector<256x128xf32> to vector<256x128xbf16>
    %cst_5 = arith.constant dense<0.000000e+00> : vector<8x128xf32>
    %13 = tpu.matmul %10, %12, %cst_5 {dimension_numbers = #tpu.dot_dimension_numbers<[1], [0], [0], [1], [0, 0, 1, 1], [], []>} : vector<8x256xbf16>, vector<256x128xbf16>, vector<8x128xf32> -> vector<8x128xf32>
    %14 = vector.broadcast %9 : vector<8x1xf32> to vector<8x128xf32>
    %15 = arith.mulf %13, %14 : vector<8x128xf32>
    %c0_6 = arith.constant 0 : index
    %c0_7 = arith.constant 0 : index
    %16 = vector.load %arg5[%c0_6, %c0_7] : memref<1x128xf32, #tpu.memory_space<vmem>>, vector<1x128xf32>
    %17 = vector.broadcast %16 : vector<1x128xf32> to vector<8x128xf32>
    %18 = arith.mulf %15, %17 : vector<8x128xf32>
    %c0_8 = arith.constant 0 : index
    %c0_9 = arith.constant 0 : index
    %19 = vector.load %arg4[%c0_8, %c0_9] : memref<8x128xf32, #tpu.memory_space<vmem>>, vector<8x128xf32>
    tpu.vector_store %arg4[%c0_8, %c0_9], %18 {strides = array<i32>} : memref<8x128xf32, #tpu.memory_space<vmem>>, vector<8x128xf32>,
    return
  }
  func.func @transform_0(%arg0: i32, %arg1: i32) -> (i32, i32) {
    %c0_i32 = arith.constant 0 : i32
    %c0_i32_0 = arith.constant 0 : i32
    return %arg1, %c0_i32 : i32, i32
  }
  func.func @transform_1(%arg0: i32, %arg1: i32) -> (i32, i32) {
    %c0_i32 = arith.constant 0 : i32
    %c0_i32_0 = arith.constant 0 : i32
    return %c0_i32, %arg0 : i32, i32
  }
  func.func @transform_2(%arg0: i32, %arg1: i32) -> (i32, i32) {
    %c0_i32 = arith.constant 0 : i32
    return %arg1, %arg0 : i32, i32
  }
}

</mosaic_0001>

<llo_original>
// kernel: cosine_classifier.1
$region0: #{cosine_classifier.1}
  #allocation0 [shape = 'u32[]', space=smem, size = 0x4, offset = 0x4, fixed_abs, tag = 'smem constant byte address 0x4 - core index']
  #allocation1 [shape = 'u32[144,128]{1,0:T(1,128)}', space=vmem, size = 0x12000, scoped, tag = 'internal scratch']
  #allocation2 [shape = 'f32[1,128]{1,0:T(1,128)}', space=vmem, size = 0x200, scoped, tag = 'scratch operand']
  %s0 = inlined_call_operand.hbm [shape: f32[16,256], index: 0, kind: input, shape index: {}]
  %s1 = inlined_call_operand.hbm [shape: f32[256,256], index: 1, kind: input, shape index: {}]
  %s2 = inlined_call_operand.hbm [shape: f32[16,256], index: 2, kind: output, shape index: {}]
  %s3 = sld [smem:[#allocation0]]
  $region53: #{cosine_classifier.1} parent=0
    _
  %s5 = ssub.s32 1, %s3
  %s6 = scalar_select 0, %s5, %s3
  $region1: #{cosine_classifier.1} parent=0
    #allocation3 [shape = 'u8[16384]{0}', space=vmem, size = 0x4000, scoped, tag = 'input window, operand 0']
    #allocation4 [shape = 's32[2]{0}', space=sflag, size = 0x8, scoped, tag = 'scoped memory for cosine_classifier.1']
    #allocation5 [shape = 's32[2]{0}', space=sflag, size = 0x8, scoped, tag = 'scoped memory for cosine_classifier.1']
    #allocation6 [shape = 'u8[262144]{0}', space=vmem, size = 0x40000, scoped, tag = 'input window, operand 1']
    #allocation7 [shape = 's32[2]{0}', space=sflag, size = 0x8, scoped, tag = 'scoped memory for cosine_classifier.1']
    #allocation8 [shape = 'u8[8192]{0}', space=vmem, size = 0x2000, scoped, tag = 'output window, operand 0']
    %7 = vsyncpa [#allocation4], 0
    %s8 = scalar_lea.sflag [#allocation4], 1
    %9 = vsyncpa %s8, 0
    %10 = vsyncpa [#allocation7], 0
    %s11 = scalar_lea.sflag [#allocation7], 1
    %12 = vsyncpa %s11, 0
    %13 = vsyncpa [#allocation5], 0
    %s14 = scalar_lea.sflag [#allocation5], 1
    %15 = vsyncpa %s14, 0
    loop: start=0, step=1, limit=6
    $region2: #{cosine_classifier.1} parent=1 // loop_pre_header
      _
    $region3: #{cosine_classifier.1} parent=1 // loop_header
      %s17 = sphi 0, %s21
      %p18 = scmp.ge.s32.totalorder %s17, 6
      %s24 = sphi 0, %s36
      %s25 = sphi 0, %s32
      %s26 = sphi 0, %s24
      %s27 = sphi 0, %s25
      %s28 = sphi 0, %s26
      %s29 = sphi 0, %s27
      %s39 = sphi 0, %s41
      %s42 = sphi 0, %s39
      %s43 = sphi 0, %s42
      %s59 = sphi 0, %s43
      %s65 = sphi 0, %s67
      %s68 = sphi 0, %s65
      %s69 = sphi 0, %s68
      %s85 = sphi 0, %s69
      %s93 = sphi 0, %s95
      %s96 = sphi 0, %s93
      %s97 = sphi 0, %s96
      %s113 = sphi 0, %s97
    $region4: #{cosine_classifier.1} parent=1 // loop_header_branch
      %20 = sbr.rel (%p18) target = $region8
    $region5: #{cosine_classifier.1} parent=1 // loop_body
      %s22 = ssub.s32 %s17, 1
      %s23 = ssub.s32 %s17, 2
      %s30 = sadd.s32 1, %s25
      %p31 = scmp.ge.s32.totalorder %s30, 2
      %s32 = scalar_select %p31, 0, %s30
      %s33 = sadd.s32 1, %s24
      %s34 = scalar_select %p31, %s33, %s24
      %p35 = scmp.ge.s32.totalorder %s34, 2
      %s36 = scalar_select %p35, 0, %s34
      %s37 = ssub.s32 %s25, %s32
      %p38 = scmp.eq.s32.totalorder %s37, 0
      %s40 = sadd.s32 %s39, 1
      %s41 = scalar_select %p38, %s39, %s40
      %p44 = pneg %p38
      %p45 = scmp.eq.s32.totalorder %s17, 3
      %p46 = por %p44, %p45
      %p47 = scmp.ne.s32.totalorder %s39, %s42
      %p48 = scmp.eq.s32.totalorder %s17, 0
      %p49 = por %p47, %p48
      %p50 = scmp.ne.s32.totalorder %s39, %s42
      %p51 = scmp.eq.s32.totalorder %s22, 3
      %p52 = por %p50, %p51
      %p53 = scmp.ne.s32.totalorder %s42, %s43
      %p54 = scmp.eq.s32.totalorder %s22, 0
      %p55 = por %p53, %p54
      %p56 = scmp.ne.s32.totalorder %s42, %s43
      %p57 = scmp.eq.s32.totalorder %s23, 3
      %p58 = por %p56, %p57
      %p60 = scmp.ne.s32.totalorder %s43, %s59
      %p61 = scmp.eq.s32.totalorder %s23, 0
      %p62 = por %p60, %p61
      %s63 = ssub.s32 %s24, %s36
      %p64 = scmp.eq.s32.totalorder %s63, 0
      %s66 = sadd.s32 %s65, 1
      %s67 = scalar_select %p64, %s65, %s66
      %p70 = pneg %p64
      %p71 = scmp.eq.s32.totalorder %s17, 3
      %p72 = por %p70, %p71
      %p73 = scmp.ne.s32.totalorder %s65, %s68
      %p74 = scmp.eq.s32.totalorder %s17, 0
      %p75 = por %p73, %p74
      %p76 = scmp.ne.s32.totalorder %s65, %s68
      %p77 = scmp.eq.s32.totalorder %s22, 3
      %p78 = por %p76, %p77
      %p79 = scmp.ne.s32.totalorder %s68, %s69
      %p80 = scmp.eq.s32.totalorder %s22, 0
      %p81 = por %p79, %p80
      %p82 = scmp.ne.s32.totalorder %s68, %s69
      %p83 = scmp.eq.s32.totalorder %s23, 3
      %p84 = por %p82, %p83
      %p86 = scmp.ne.s32.totalorder %s69, %s85
      %p87 = scmp.eq.s32.totalorder %s23, 0
      %p88 = por %p86, %p87
      %s89 = ssub.s32 %s25, %s32
      %s90 = ssub.s32 %s24, %s36
      %s91 = sor.u32 %s89, %s90
      %p92 = scmp.eq.s32.totalorder %s91, 0
      %s94 = sadd.s32 %s93, 1
      %s95 = scalar_select %p92, %s93, %s94
      %p98 = pneg %p92
      %p99 = scmp.eq.s32.totalorder %s17, 3
      %p100 = por %p98, %p99
      %p101 = scmp.ne.s32.totalorder %s93, %s96
      %p102 = scmp.eq.s32.totalorder %s17, 0
      %p103 = por %p101, %p102
      %p104 = scmp.ne.s32.totalorder %s93, %s96
      %p105 = scmp.eq.s32.totalorder %s22, 3
      %p106 = por %p104, %p105
      %p107 = scmp.ne.s32.totalorder %s96, %s97
      %p108 = scmp.eq.s32.totalorder %s22, 0
      %p109 = por %p107, %p108
      %p110 = scmp.ne.s32.totalorder %s96, %s97
      %p111 = scmp.eq.s32.totalorder %s23, 3
      %p112 = por %p110, %p111
      %p114 = scmp.ne.s32.totalorder %s97, %s113
      %p115 = scmp.eq.s32.totalorder %s23, 0
      %p116 = por %p114, %p115
      %p117 = scmp.le.s32.totalorder 1, %s17
      %p118 = scmp.lt.s32.totalorder %s17, 5
      %p119 = pnand %p117, %p118
      %p120 = pneg %p119
      // Predicated region
      $region9: #{cosine_classifier.1} parent=5 // pred_check
        _
      $region10: #{cosine_classifier.1} parent=5 // pred_check_branch
        %122 = sbr.rel (%p119) target = $region12
      $region11: #{cosine_classifier.1} parent=5 // pred_region
        %s123 = ssub.s32 %s17, 1
      $region12: #{cosine_classifier.1} parent=5 // pred_fallthru
        _
      %p124 = scmp.lt.s32.totalorder %s17, 4
      // Predicated region
      $region13: #{cosine_classifier.1} parent=5 // pred_check
        %p125 = pneg %p124
      $region14: #{cosine_classifier.1} parent=5 // pred_check_branch
        %127 = sbr.rel (%p125) target = $region16
      $region15: #{cosine_classifier.1} parent=5 // pred_region
        // Predicated region
        $region17: #{cosine_classifier.1} parent=15 // pred_check
          %p128 = pneg %p49
        $region18: #{cosine_classifier.1} parent=15 // pred_check_branch
          %130 = sbr.rel (%p128) target = $region20
        $region19: #{cosine_classifier.1} parent=15 // pred_region
          %s131 = sand.u32 %s39, 1
          %s132 = scalar_lea.sflag [#allocation4], %s131
          %s133 = sand.u32 %s39, 1
          %s134 = smul.addr %s133, 16
          %s135 = scalar_lea.vmem [#allocation3], %s134
          %s137 = ssub.s32 256, 256
          %138 = vsyncadd %s132, %s137
          %s139 = smul.addr %s25, 2
          %s140 = smul.addr %s139, 128
          %s141 = scalar_lea.hbm %s0, %s140
          %s143 = sshll.u32 %s135, 4
          %s144 = int_to_ptr.vmem [resolvable:$true] %s143
          %146 = dma.hbm_to_vmem [thread:$0]  %s141, 256, %s144, %s132
        $region20: #{cosine_classifier.1} parent=15 // pred_fallthru
          _
        // Predicated region
        $region21: #{cosine_classifier.1} parent=15 // pred_check
          %p147 = pneg %p75
        $region22: #{cosine_classifier.1} parent=15 // pred_check_branch
          %149 = sbr.rel (%p147) target = $region24
        $region23: #{cosine_classifier.1} parent=15 // pred_region
          %s150 = sand.u32 %s65, 1
          %s151 = scalar_lea.sflag [#allocation7], %s150
          %s152 = sand.u32 %s65, 1
          %s153 = smul.addr %s152, 256
          %s154 = scalar_lea.vmem [#allocation6], %s153
          %s156 = ssub.s32 4096, 4096
          %157 = vsyncadd %s151, %s156
          %s158 = smul.addr %s24, 128
          %s159 = scalar_lea.hbm %s1, %s158
          %s160 = sshll.u32 %s154, 4
          %s161 = int_to_ptr.vmem [resolvable:$true] %s160
          %166 = dma.hbm_to_vmem [thread:$0]  %s159, 4096, %s161, %s151, 256, 128, 8
        $region24: #{cosine_classifier.1} parent=15 // pred_fallthru
          _
      $region16: #{cosine_classifier.1} parent=5 // pred_fallthru
        _
      %p167 = scmp.le.s32.totalorder 1, %s17
      %p168 = scmp.lt.s32.totalorder %s17, 5
      %p169 = pnand %p167, %p168
      %p170 = pneg %p169
      // Predicated region
      $region25: #{cosine_classifier.1} parent=5 // pred_check
        _
      $region26: #{cosine_classifier.1} parent=5 // pred_check_branch
        %172 = sbr.rel (%p169) target = $region28
      $region27: #{cosine_classifier.1} parent=5 // pred_region
        %s173 = ssub.s32 %s17, 1
        %s174 = sand.u32 %s42, 1
        %s175 = scalar_lea.sflag [#allocation4], %s174
        %s176 = sand.u32 %s42, 1
        %s177 = smul.addr %s176, 16
        %s178 = scalar_lea.vmem [#allocation3], %s177
        // Predicated region
        $region29: #{cosine_classifier.1} parent=27 // pred_check
          %p179 = pneg %p55
        $region30: #{cosine_classifier.1} parent=27 // pred_check_branch
          %181 = sbr.rel (%p179) target = $region32
        $region31: #{cosine_classifier.1} parent=27 // pred_region
          %182 = dma.done %s175, 256
        $region32: #{cosine_classifier.1} parent=27 // pred_fallthru
          _
        %s183 = sand.u32 %s68, 1
        %s184 = scalar_lea.sflag [#allocation7], %s183
        %s185 = sand.u32 %s68, 1
        %s186 = smul.addr %s185, 256
        %s187 = scalar_lea.vmem [#allocation6], %s186
        // Predicated region
        $region33: #{cosine_classifier.1} parent=27 // pred_check
          %p188 = pneg %p81
        $region34: #{cosine_classifier.1} parent=27 // pred_check_branch
          %190 = sbr.rel (%p188) target = $region36
        $region35: #{cosine_classifier.1} parent=27 // pred_region
          %191 = dma.done %s184, 4096
        $region36: #{cosine_classifier.1} parent=27 // pred_fallthru
          _
        %s192 = sand.u32 %s42, 1
        %s193 = scalar_lea.sflag [#allocation4], %s192
        %s194 = sand.u32 %s42, 1
        %s195 = smul.addr %s194, 16
        %s196 = scalar_lea.vmem [#allocation3], %s195
        %p197 = pneg %p55
        %p198 = pneg %p52
        %s199 = sand.u32 %s68, 1
        %s200 = scalar_lea.sflag [#allocation7], %s199
        %s201 = sand.u32 %s68, 1
        %s202 = smul.addr %s201, 256
        %s203 = scalar_lea.vmem [#allocation6], %s202
        %p204 = pneg %p81
        %p205 = pneg %p78
        %p206 = pneg %p109
        %p207 = pneg %p106
        %s208 = sand.u32 %s96, 1
        %s209 = scalar_lea.sflag [#allocation5], %s208
        %s210 = sand.u32 %s96, 1
        %s211 = smul.addr %s210, 8
        %s212 = scalar_lea.vmem [#allocation8], %s211
        %p214 = scmp.eq.s32.totalorder %s27, 0
        // Predicated region
        $region37: #{cosine_classifier.1} parent=27 // pred_check
          %p215 = pneg %p214
        $region38: #{cosine_classifier.1} parent=27 // pred_check_branch
          %217 = sbr.rel (%p215) target = $region40
        $region39: #{cosine_classifier.1} parent=27 // pred_region
          %v218 = vld [vmem:[%s187] sm:$0xff]
          %v219 = vld [vmem:[%s187 + $0x8] sm:$0xff]
          %v220 = vld [vmem:[%s187 + $0x10] sm:$0xff]
          %v221 = vld [vmem:[%s187 + $0x18] sm:$0xff]
          %v222 = vld [vmem:[%s187 + $0x20] sm:$0xff]
          %v223 = vld [vmem:[%s187 + $0x28] sm:$0xff]
          %v224 = vld [vmem:[%s187 + $0x30] sm:$0xff]
          %v225 = vld [vmem:[%s187 + $0x38] sm:$0xff]
          %v226 = vld [vmem:[%s187 + $0x40] sm:$0xff]
          %v227 = vld [vmem:[%s187 + $0x48] sm:$0xff]
          %v228 = vld [vmem:[%s187 + $0x50] sm:$0xff]
          %v229 = vld [vmem:[%s187 + $0x58] sm:$0xff]
          %v230 = vld [vmem:[%s187 + $0x60] sm:$0xff]
          %v231 = vld [vmem:[%s187 + $0x68] sm:$0xff]
          %v232 = vld [vmem:[%s187 + $0x70] sm:$0xff]
          %v233 = vld [vmem:[%s187 + $0x78] sm:$0xff]
          %v234 = vld [vmem:[%s187 + $0x80] sm:$0xff]
          %v235 = vld [vmem:[%s187 + $0x88] sm:$0xff]
          %v236 = vld [vmem:[%s187 + $0x90] sm:$0xff]
          %v237 = vld [vmem:[%s187 + $0x98] sm:$0xff]
          %v238 = vld [vmem:[%s187 + $0xa0] sm:$0xff]
          %v239 = vld [vmem:[%s187 + $0xa8] sm:$0xff]
          %v240 = vld [vmem:[%s187 + $0xb0] sm:$0xff]
          %v241 = vld [vmem:[%s187 + $0xb8] sm:$0xff]
          %v242 = vld [vmem:[%s187 + $0xc0] sm:$0xff]
          %v243 = vld [vmem:[%s187 + $0xc8] sm:$0xff]
          %v244 = vld [vmem:[%s187 + $0xd0] sm:$0xff]
          %v245 = vld [vmem:[%s187 + $0xd8] sm:$0xff]
          %v246 = vld [vmem:[%s187 + $0xe0] sm:$0xff]
          %v247 = vld [vmem:[%s187 + $0xe8] sm:$0xff]
          %v248 = vld [vmem:[%s187 + $0xf0] sm:$0xff]
          %v249 = vld [vmem:[%s187 + $0xf8] sm:$0xff]
          %v250 = vmul.f32 %v218, %v218
          %v251 = vmul.f32 %v219, %v219
          %v252 = vmul.f32 %v220, %v220
          %v253 = vmul.f32 %v221, %v221
          %v254 = vmul.f32 %v222, %v222
          %v255 = vmul.f32 %v223, %v223
          %v256 = vmul.f32 %v224, %v224
          %v257 = vmul.f32 %v225, %v225
          %v258 = vmul.f32 %v226, %v226
          %v259 = vmul.f32 %v227, %v227
          %v260 = vmul.f32 %v228, %v228
          %v261 = vmul.f32 %v229, %v229
          %v262 = vmul.f32 %v230, %v230
          %v263 = vmul.f32 %v231, %v231
          %v264 = vmul.f32 %v232, %v232
          %v265 = vmul.f32 %v233, %v233
          %v266 = vmul.f32 %v234, %v234
          %v267 = vmul.f32 %v235, %v235
          %v268 = vmul.f32 %v236, %v236
          %v269 = vmul.f32 %v237, %v237
          %v270 = vmul.f32 %v238, %v238
          %v271 = vmul.f32 %v239, %v239
          %v272 = vmul.f32 %v240, %v240
          %v273 = vmul.f32 %v241, %v241
          %v274 = vmul.f32 %v242, %v242
          %v275 = vmul.f32 %v243, %v243
          %v276 = vmul.f32 %v244, %v244
          %v277 = vmul.f32 %v245, %v245
          %v278 = vmul.f32 %v246, %v246
          %v279 = vmul.f32 %v247, %v247
          %v280 = vmul.f32 %v248, %v248
          %v281 = vmul.f32 %v249, %v249
          %v282 = vadd.f32 %v250, %v251
          %v283 = vadd.f32 %v282, %v252
          %v284 = vadd.f32 %v283, %v253
          %v285 = vadd.f32 %v284, %v254
          %v286 = vadd.f32 %v285, %v255
          %v287 = vadd.f32 %v286, %v256
          %v288 = vadd.f32 %v287, %v257
          %v289 = vadd.f32 %v288, %v258
          %v290 = vadd.f32 %v289, %v259
          %v291 = vadd.f32 %v290, %v260
          %v292 = vadd.f32 %v291, %v261
          %v293 = vadd.f32 %v292, %v262
          %v294 = vadd.f32 %v293, %v263
          %v295 = vadd.f32 %v294, %v264
          %v296 = vadd.f32 %v295, %v265
          %v297 = vadd.f32 %v296, %v266
          %v298 = vadd.f32 %v297, %v267
          %v299 = vadd.f32 %v298, %v268
          %v300 = vadd.f32 %v299, %v269
          %v301 = vadd.f32 %v300, %v270
          %v302 = vadd.f32 %v301, %v271
          %v303 = vadd.f32 %v302, %v272
          %v304 = vadd.f32 %v303, %v273
          %v305 = vadd.f32 %v304, %v274
          %v306 = vadd.f32 %v305, %v275
          %v307 = vadd.f32 %v306, %v276
          %v308 = vadd.f32 %v307, %v277
          %v309 = vadd.f32 %v308, %v278
          %v310 = vadd.f32 %v309, %v279
          %v311 = vadd.f32 %v310, %v280
          %v312 = vadd.f32 %v311, %v281
          %v313 = vrot.slane %v312, 4
          %v314 = vadd.f32 %v312, %v313
          %v315 = vrot.slane %v314, 2
          %v316 = vadd.f32 %v314, %v315
          %v317 = vrot.slane %v316, 1
          %v318 = vadd.f32 %v316, %v317
          %v319 = vmax.f32 %v318, 1e-24
          %v320 = vrsqrt.pop %v319
          %321 = vst [vmem:[#allocation2] sm:$0x1] %v320
        $region40: #{cosine_classifier.1} parent=27 // pred_fallthru
          _
        %v322 = vld [vmem:[%s178] sm:$0xff]
        %v323 = vld [vmem:[%s178 + $0x8] sm:$0xff]
        %v324 = vmul.f32 %v322, %v322
        %v325 = vmul.f32 %v323, %v323
        %v326 = vadd.f32 %v324, %v325
        %327 = vadd.xlane.f32.xlu0 %v326
        %v328 = vpop.xlane.xlu0 %327
        %v329 = vmax.f32 %v328, 1e-24
        %v330 = vrsqrt.pop %v329
        %v331 = vpack.c.bf16 %v322, %v322
        %v332 = vpack.c.bf16 %v323, %v323
        %v333 = vld [vmem:[%s187] sm:$0xff]
        %v334 = vld [vmem:[%s187 + $0x8] sm:$0xff]
        %v335 = vld [vmem:[%s187 + $0x10] sm:$0xff]
        %v336 = vld [vmem:[%s187 + $0x18] sm:$0xff]
        %v337 = vld [vmem:[%s187 + $0x20] sm:$0xff]
        %v338 = vld [vmem:[%s187 + $0x28] sm:$0xff]
        %v339 = vld [vmem:[%s187 + $0x30] sm:$0xff]
        %v340 = vld [vmem:[%s187 + $0x38] sm:$0xff]
        %v341 = vld [vmem:[%s187 + $0x40] sm:$0xff]
        %v342 = vld [vmem:[%s187 + $0x48] sm:$0xff]
        %v343 = vld [vmem:[%s187 + $0x50] sm:$0xff]
        %v344 = vld [vmem:[%s187 + $0x58] sm:$0xff]
        %v345 = vld [vmem:[%s187 + $0x60] sm:$0xff]
        %v346 = vld [vmem:[%s187 + $0x68] sm:$0xff]
        %v347 = vld [vmem:[%s187 + $0x70] sm:$0xff]
        %v348 = vld [vmem:[%s187 + $0x78] sm:$0xff]
        %v349 = vld [vmem:[%s187 + $0x80] sm:$0xff]
        %v350 = vld [vmem:[%s187 + $0x88] sm:$0xff]
        %v351 = vld [vmem:[%s187 + $0x90] sm:$0xff]
        %v352 = vld [vmem:[%s187 + $0x98] sm:$0xff]
        %v353 = vld [vmem:[%s187 + $0xa0] sm:$0xff]
        %v354 = vld [vmem:[%s187 + $0xa8] sm:$0xff]
        %v355 = vld [vmem:[%s187 + $0xb0] sm:$0xff]
        %v356 = vld [vmem:[%s187 + $0xb8] sm:$0xff]
        %v357 = vld [vmem:[%s187 + $0xc0] sm:$0xff]
        %v358 = vld [vmem:[%s187 + $0xc8] sm:$0xff]
        %v359 = vld [vmem:[%s187 + $0xd0] sm:$0xff]
        %v360 = vld [vmem:[%s187 + $0xd8] sm:$0xff]
        %v361 = vld [vmem:[%s187 + $0xe0] sm:$0xff]
        %v362 = vld [vmem:[%s187 + $0xe8] sm:$0xff]
        %v363 = vld [vmem:[%s187 + $0xf0] sm:$0xff]
        %v364 = vld [vmem:[%s187 + $0xf8] sm:$0xff]
        %v365 = vpack.c.bf16 %v334, %v333
        %v366 = vpack.c.bf16 %v336, %v335
        %v367 = vpack.c.bf16 %v338, %v337
        %v368 = vpack.c.bf16 %v340, %v339
        %v369 = vpack.c.bf16 %v342, %v341
        %v370 = vpack.c.bf16 %v344, %v343
        %v371 = vpack.c.bf16 %v346, %v345
        %v372 = vpack.c.bf16 %v348, %v347
        %v373 = vpack.c.bf16 %v350, %v349
        %v374 = vpack.c.bf16 %v352, %v351
        %v375 = vpack.c.bf16 %v354, %v353
        %v376 = vpack.c.bf16 %v356, %v355
        %v377 = vpack.c.bf16 %v358, %v357
        %v378 = vpack.c.bf16 %v360, %v359
        %v379 = vpack.c.bf16 %v362, %v361
        %v380 = vpack.c.bf16 %v364, %v363
        %381 = vmatprep.subr.bf16.mxu0 0
        %382 = vmatpush1.bf16.msra.mxu0 %v365
        %383 = vmatprep.subr.bf16.mxu0 0
        %384 = vmatpush1.bf16.msra.mxu0 %v366
        %385 = vmatprep.subr.bf16.mxu0 0
        %386 = vmatpush1.bf16.msra.mxu0 %v367
        %387 = vmatprep.subr.bf16.mxu0 0
        %388 = vmatpush1.bf16.msra.mxu0 %v368
        %389 = vmatprep.subr.bf16.mxu0 0
        %390 = vmatpush1.bf16.msra.mxu0 %v369
        %391 = vmatprep.subr.bf16.mxu0 0
        %392 = vmatpush1.bf16.msra.mxu0 %v370
        %393 = vmatprep.subr.bf16.mxu0 0
        %394 = vmatpush1.bf16.msra.mxu0 %v371
        %395 = vmatprep.subr.bf16.mxu0 0
        %396 = vmatpush1.bf16.msra.mxu0 %v372
        %397 = vmatprep.subr.bf16.mxu0 0
        %398 = vmatpush1.bf16.msra.mxu0 %v373
        %399 = vmatprep.subr.bf16.mxu0 0
        %400 = vmatpush1.bf16.msra.mxu0 %v374
        %401 = vmatprep.subr.bf16.mxu0 0
        %402 = vmatpush1.bf16.msra.mxu0 %v375
        %403 = vmatprep.subr.bf16.mxu0 0
        %404 = vmatpush1.bf16.msra.mxu0 %v376
        %405 = vmatprep.subr.bf16.mxu0 0
        %406 = vmatpush1.bf16.msra.mxu0 %v377
        %407 = vmatprep.subr.bf16.mxu0 0
        %408 = vmatpush1.bf16.msra.mxu0 %v378
        %409 = vmatprep.subr.bf16.mxu0 0
        %410 = vmatpush1.bf16.msra.mxu0 %v379
        %411 = vmatprep.subr.bf16.mxu0 0
        %412 = vmatpush1.bf16.msra.mxu0 %v380
        %413 = vmatprep.mubr.bf16.mxu0 %v332
        %414 = vmatmul.mubr.bf16.gmra.mrb[0].mxu0 %v331
        %v415 = vpop.f32.mrb[0].mxu0
        %v416 = vadd.f32 0.0, %v415
        %v417 = vpop.f32.mrb[0].mxu0
        %v418 = vpop.f32.mrb[0].mxu0
        %v419 = vpop.f32.mrb[0].mxu0
        %420 = vdwg.mxu0
        %v421 = vmul.f32 %v416, %v330
        %v422 = vld [vmem:[#allocation2] sm:$0x1]
        %v424 = vlaneseq
        %v425 = vshrl.u32 %v424, 7
        %v426 = vsub.s32 0, %v425
        %v427 = vrot.slane %v422, %v426
        %v429 = vmul.f32 %v421, %v427
        %430 = vst [vmem:[%s212] sm:$0xff] %v429
        %s431 = sand.u32 %s96, 1
        %s432 = scalar_lea.sflag [#allocation5], %s431
        %s433 = sand.u32 %s96, 1
        %s434 = smul.addr %s433, 8
        %s435 = scalar_lea.vmem [#allocation8], %s434
        // Predicated region
        $region41: #{cosine_classifier.1} parent=27 // pred_check
          %p436 = pneg %p106
        $region42: #{cosine_classifier.1} parent=27 // pred_check_branch
          %438 = sbr.rel (%p436) target = $region44
        $region43: #{cosine_classifier.1} parent=27 // pred_region
          %s440 = ssub.s32 128, 128
          %441 = vsyncadd %s432, %s440
          %s442 = smul.addr %s27, 2
          %s443 = sadd.s32 %s26, %s442
          %s444 = smul.addr %s443, 128
          %s445 = scalar_lea.hbm %s2, %s444
          %s447 = sshll.u32 %s435, 4
          %s448 = int_to_ptr.vmem [resolvable:$true] %s447
          %450 = dma.vmem_to_hbm [thread:$0]  %s448, 128, %s445, %s432
        $region44: #{cosine_classifier.1} parent=27 // pred_fallthru
          _
      $region28: #{cosine_classifier.1} parent=5 // pred_fallthru
        _
      %p451 = scmp.le.s32.totalorder 2, %s17
      // Predicated region
      $region45: #{cosine_classifier.1} parent=5 // pred_check
        %p452 = pneg %p451
      $region46: #{cosine_classifier.1} parent=5 // pred_check_branch
        %454 = sbr.rel (%p452) target = $region48
      $region47: #{cosine_classifier.1} parent=5 // pred_region
        %s455 = ssub.s32 %s17, 2
        // Predicated region
        $region49: #{cosine_classifier.1} parent=47 // pred_check
          %p456 = pneg %p112
        $region50: #{cosine_classifier.1} parent=47 // pred_check_branch
          %458 = sbr.rel (%p456) target = $region52
        $region51: #{cosine_classifier.1} parent=47 // pred_region
          %s459 = sand.u32 %s97, 1
          %s460 = scalar_lea.sflag [#allocation5], %s459
          %s461 = sand.u32 %s97, 1
          %s462 = smul.addr %s461, 8
          %s463 = scalar_lea.vmem [#allocation8], %s462
          %464 = dma.done %s460, 128
        $region52: #{cosine_classifier.1} parent=47 // pred_fallthru
          _
      $region48: #{cosine_classifier.1} parent=5 // pred_fallthru
        _
    $region6: #{cosine_classifier.1} parent=1 // loop_footer
      %s21 = sadd.s32 1, %s17
    $region7: #{cosine_classifier.1} parent=1 // loop_footer_branch
      %16 = sbr.rel target = $region3
    $region8: #{cosine_classifier.1} parent=1 // loop_exit
      _
    %465 = vsyncpa [#allocation4], 1
    %s466 = scalar_lea.sflag [#allocation4], 1
    %467 = vsyncpa %s466, 1
    %468 = vsyncpa [#allocation7], 1
    %s469 = scalar_lea.sflag [#allocation7], 1
    %470 = vsyncpa %s469, 1
    %471 = vsyncpa [#allocation5], 1
    %s472 = scalar_lea.sflag [#allocation5], 1
    %473 = vsyncpa %s472, 1

</llo_original>
